<compile_context>
chip_gen: v7x
topology: tpu7x:2x2x1
jax: 0.10.0
libtpu: 0.0.40
codegen_flags: <defaults>
</compile_context>

<pallas_src>
import jax
import jax.numpy as jnp
import numpy as np
from jax.experimental import pallas as pl
from jax.experimental.pallas import tpu as pltpu

VMEM = pltpu.MemorySpace.VMEM
SMEM = pltpu.MemorySpace.SMEM

COMBINE_DTYPE = jnp.bfloat16   # MXU operand dtype for the dominant GEMM


def _round_up(x, m):
    return ((x + m - 1) // m) * m


# ---------------------------------------------------------------------------
# Kernels
# ---------------------------------------------------------------------------
def branch_mlp_kernel(x_ref, w0_ref, wstack_ref, b_ref, basis_ref):
    """Branch MLP tile: (TM, B) -> basis (TM, H), f32 compute, bf16 store.

    x_ref      : (TM, B)   VMEM
    w0_ref     : (B, H)    VMEM
    wstack_ref : (2, H, H) VMEM   [wb1, wb2]
    b_ref      : (3, H)    VMEM   rows [bb0, bb1, bb2]
    basis_ref  : (TM, H)   VMEM   bf16 output
    """
    f32 = jnp.float32
    b = b_ref[...]
    bb0, bb1, bb2 = b[0:1, :], b[1:2, :], b[2:3, :]

    h = jnp.dot(x_ref[...], w0_ref[...], preferred_element_type=f32) + bb0
    h = jnp.maximum(h, 0.0)
    h = jnp.dot(h, wstack_ref[0], preferred_element_type=f32) + bb1
    h = jnp.maximum(h, 0.0)
    h = jnp.dot(h, wstack_ref[1], preferred_element_type=f32) + bb2
    basis_ref[...] = h.astype(basis_ref.dtype)


def trunk_mlp_kernel(xT_ref, misc_ref, wstack_ref, qT_ref):
    """Trunk MLP tile in transposed layout: (2, TN) -> query^T (H, TN).

    xT_ref     : (2, TN)   VMEM   trunk coordinates, transposed
    misc_ref   : (H, 5)    VMEM   cols [wt0^T[:,0], wt0^T[:,1], bt0, bt1, bt2]
    wstack_ref : (2, H, H) VMEM   [wt1^T, wt2^T]
    qT_ref     : (H, TN)   VMEM   bf16 output
    """
    f32 = jnp.float32
    misc = misc_ref[...]
    w0c0, w0c1 = misc[:, 0:1], misc[:, 1:2]
    bt0, bt1, bt2 = misc[:, 2:3], misc[:, 3:4], misc[:, 4:5]

    xT = xT_ref[...]
    # First layer (K = trunk_size = 2) on the VPU: two broadcast-FMAs,
    # lane-dense along the P axis.
    t = w0c0 * xT[0:1, :] + w0c1 * xT[1:2, :] + bt0
    t = jnp.maximum(t, 0.0)
    t = jnp.dot(wstack_ref[0], t, preferred_element_type=f32) + bt1
    t = jnp.maximum(t, 0.0)
    t = jnp.dot(wstack_ref[1], t, preferred_element_type=f32) + bt2
    qT_ref[...] = t.astype(qT_ref.dtype)


def combine_kernel(basis_ref, qT_ref, bias_ref, out_ref):
    """Combination tile: out = basis @ query^T + bias.

    basis_ref : (TM, H)  VMEM  bf16
    qT_ref    : (H, TN)  VMEM  bf16
    bias_ref  : (1,)     SMEM  f32 scalar DeepONet bias
    out_ref   : (TM, TN) VMEM  f32
    """
    acc = jnp.dot(basis_ref[...], qT_ref[...], preferred_element_type=jnp.float32)
    out_ref[...] = acc + bias_ref[0]


# ---------------------------------------------------------------------------
# Parameter packing (done ONCE, outside the forward)
# ---------------------------------------------------------------------------
def pack_params(params):
    """Re-layout raw parameters for the kernels. Call once and cache."""
    f32 = jnp.float32
    packed = {
        # branch path (row-major, x @ W + b)
        "br_w0": params["wb0"].astype(f32),                                  # (B, H)
        "br_wstack": jnp.stack([params["wb1"], params["wb2"]]).astype(f32),  # (2, H, H)
        "br_b": jnp.concatenate(
            [params["bb0"], params["bb1"], params["bb2"]], axis=0).astype(f32),  # (3, H)
        # trunk path (transposed layout, W^T @ x^T + b^T)
        "tr_misc": jnp.concatenate(
            [params["wt0"].T,                 # (H, 2)
             params["bt0"].T, params["bt1"].T, params["bt2"].T], axis=1).astype(f32),  # (H, 5)
        "tr_wstack": jnp.stack([params["wt1"].T, params["wt2"].T]).astype(f32),  # (2, H, H)
        # DeepONet scalar bias
        "bias": params["bias"].reshape((1,)).astype(f32),
        "hidden_size": params["wb0"].shape[1],
    }
    return packed


# ---------------------------------------------------------------------------
# Forward
# ---------------------------------------------------------------------------
def deeponet_forward(branch, trunk, packed, *, tile_m=256, tile_n=512):
    """branch: (N, B) f32, trunk: (P, 2) f32  ->  (N, P) f32."""
    N, B = branch.shape
    P = trunk.shape[0]
    H = packed["hidden_size"]

    # Tile sizes: sublane-packed (16) for the bf16 lhs, lane-dense (128) for
    # the output; capped so per-step double-buffered VMEM stays small.
    TM = min(tile_m, _round_up(N, 16))
    TN = min(tile_n, _round_up(P, 128))
    Np = _round_up(N, TM)
    Pp = _round_up(P, TN)

    # Conditional padding: skipped entirely when already tile-aligned.
    branch_p = branch if Np == N else jnp.pad(branch, ((0, Np - N), (0, 0)))
    trunk_T = trunk.T                                    # (2, P)
    trunk_Tp = trunk_T if Pp == P else jnp.pad(trunk_T, ((0, 0), (0, Pp - P)))

    # --- Phase 1a: branch MLP -> basis (Np, H) bf16, tiled over N ------------
    basis = pl.pallas_call(
        branch_mlp_kernel,
        out_shape=jax.ShapeDtypeStruct((Np, H), COMBINE_DTYPE),
        grid=(Np // TM,),
        in_specs=[
            pl.BlockSpec((TM, B), lambda i: (i, 0)),
            pl.BlockSpec(memory_space=VMEM),   # br_w0     (B, H)
            pl.BlockSpec(memory_space=VMEM),   # br_wstack (2, H, H)
            pl.BlockSpec(memory_space=VMEM),   # br_b      (3, H)
        ],
        out_specs=pl.BlockSpec((TM, H), lambda i: (i, 0)),
        compiler_params=pltpu.CompilerParams(dimension_semantics=("parallel",)),
    )(branch_p, packed["br_w0"], packed["br_wstack"], packed["br_b"])

    # --- Phase 1b: trunk MLP (transposed) -> query^T (H, Pp) bf16 -----------
    query_T = pl.pallas_call(
        trunk_mlp_kernel,
        out_shape=jax.ShapeDtypeStruct((H, Pp), COMBINE_DTYPE),
        grid=(Pp // TN,),
        in_specs=[
            pl.BlockSpec((2, TN), lambda j: (0, j)),
            pl.BlockSpec(memory_space=VMEM),   # tr_misc   (H, 5)
            pl.BlockSpec(memory_space=VMEM),   # tr_wstack (2, H, H)
        ],
        out_specs=pl.BlockSpec((H, TN), lambda j: (0, j)),
        compiler_params=pltpu.CompilerParams(dimension_semantics=("parallel",)),
    )(trunk_Tp, packed["tr_misc"], packed["tr_wstack"])

    # --- Phase 2: tiled combination GEMM: basis @ query^T + bias ------------
    out_p = pl.pallas_call(
        combine_kernel,
        out_shape=jax.ShapeDtypeStruct((Np, Pp), jnp.float32),
        grid=(Np // TM, Pp // TN),
        in_specs=[
            pl.BlockSpec((TM, H), lambda i, j: (i, 0)),
            pl.BlockSpec((H, TN), lambda i, j: (0, j)),
            pl.BlockSpec(memory_space=SMEM),   # scalar bias (1,)
        ],
        out_specs=pl.BlockSpec((TM, TN), lambda i, j: (i, j)),
        compiler_params=pltpu.CompilerParams(
            dimension_semantics=("parallel", "parallel")),
        cost_estimate=pl.CostEstimate(
            flops=2 * N * P * H,
            transcendentals=0,
            bytes_accessed=4 * Np * Pp + 2 * (Np * H + H * Pp)),
    )(basis, query_T, packed["bias"])

    if Np == N and Pp == P:
        return out_p
    return out_p[:N, :P]


# ---------------------------------------------------------------------------
# Init + reference
# ---------------------------------------------------------------------------
def init_params(key, branch_size, trunk_size, hidden_size):
    """Deterministic synthetic parameter init (Kaiming-like scale)."""
    ks = jax.random.split(key, 6)

    def lin(k, fan_in, fan_out):
        return jax.random.normal(k, (fan_in, fan_out), jnp.float32) / np.sqrt(fan_in)

    return {
        # Branch MLP: branch_size -> hidden -> hidden -> hidden
        "wb0": lin(ks[0], branch_size, hidden_size),
        "bb0": jnp.zeros((1, hidden_size), jnp.float32),
        "wb1": lin(ks[1], hidden_size, hidden_size),
        "bb1": jnp.zeros((1, hidden_size), jnp.float32),
        "wb2": lin(ks[2], hidden_size, hidden_size),
        "bb2": jnp.zeros((1, hidden_size), jnp.float32),
        # Trunk MLP: trunk_size(=2) -> hidden -> hidden -> hidden
        "wt0": lin(ks[3], trunk_size, hidden_size),
        "bt0": jnp.zeros((1, hidden_size), jnp.float32),
        "wt1": lin(ks[4], hidden_size, hidden_size),
        "bt1": jnp.zeros((1, hidden_size), jnp.float32),
        "wt2": lin(ks[5], hidden_size, hidden_size),
        "bt2": jnp.zeros((1, hidden_size), jnp.float32),
        # DeepONet scalar bias (nn.Parameter(torch.zeros(1)))
        "bias": jnp.zeros((1,), jnp.float32),
    }


def reference_forward(branch, trunk, p):
    """Plain-JAX f32 reference (module semantics) for correctness check."""
    with jax.default_matmul_precision("float32"):
        h = jnp.maximum(branch @ p["wb0"] + p["bb0"], 0.0)
        h = jnp.maximum(h @ p["wb1"] + p["bb1"], 0.0)
        basis = h @ p["wb2"] + p["bb2"]
        t = jnp.maximum(trunk @ p["wt0"] + p["bt0"], 0.0)
        t = jnp.maximum(t @ p["wt1"] + p["bt1"], 0.0)
        query = t @ p["wt2"] + p["bt2"]
        return basis @ query.T + p["bias"]


if __name__ == "__main__":
    # Small shapes consistent with the module's forward:
    #   branch: (n_sample, n_basis) = (8, 16)
    #   trunk : (n_points, 2)       = (64, 2)
    #   hidden_size = 32, num_layers = 3
    n_sample, branch_size, trunk_size, hidden_size, n_points = 8, 16, 2, 32, 64

    key = jax.random.PRNGKey(0)
    k_branch, k_trunk, k_params = jax.random.split(key, 3)

    branch = jax.random.normal(k_branch, (n_sample, branch_size), jnp.float32)
    trunk = jax.random.uniform(k_trunk, (n_points, trunk_size), jnp.float32)
    params = init_params(k_params, branch_size, trunk_size, hidden_size)

    packed = pack_params(params)          # hoisted: packed once, reused per call

    out = deeponet_forward(branch, trunk, packed)
    out = jax.block_until_ready(out)

    ref = reference_forward(branch, trunk, params)
    assert out.shape == (n_sample, n_points)
    # Combination GEMM runs with bf16 MXU operands (f32 accumulate), so
    # tolerances are relaxed vs. the pure-f32 reference.
    np.testing.assert_allclose(np.asarray(out), np.asarray(ref),
                               rtol=2e-2, atol=5e-2)

    print("KERNEL_OK")
</pallas_src>

<mosaic_0001>
module attributes {stable_mosaic.version = 11 : i64} {
  func.func @branch_mlp_kernel(%arg0: i32, %arg1: memref<16x16xf32, #tpu.memory_space<vmem>>, %arg2: memref<16x32xf32, #tpu.memory_space<vmem>>, %arg3: memref<2x32x32xf32, #tpu.memory_space<vmem>>, %arg4: memref<3x32xf32, #tpu.memory_space<vmem>>, %arg5: memref<16x32xbf16, #tpu.memory_space<vmem>>) attributes {dimension_semantics = [#tpu.dimension_semantics<parallel>], iteration_bounds = array<i64: 1>, scalar_prefetch = 0 : i64, scratch_operands = 0 : i64, tpu.core_type = #tpu.core_type<tc>, window_params = [{transform_indices = @transform_0, window_bounds = array<i64: 16, 16>}, {pipeline_mode = #tpu.pipeline_mode<synchronous>, transform_indices = @transform_1, window_bounds = array<i64: 16, 32>}, {pipeline_mode = #tpu.pipeline_mode<synchronous>, transform_indices = @transform_2, window_bounds = array<i64: 2, 32, 32>}, {pipeline_mode = #tpu.pipeline_mode<synchronous>, transform_indices = @transform_3, window_bounds = array<i64: 3, 32>}, {transform_indices = @transform_4, window_bounds = array<i64: 16, 32>}]} {
    %c0 = arith.constant 0 : index
    %c0_0 = arith.constant 0 : index
    %0 = vector.load %arg4[%c0, %c0_0] : memref<3x32xf32, #tpu.memory_space<vmem>>, vector<3x32xf32>
    %1 = vector.extract_strided_slice %0 {offsets = [0, 0], sizes = [1, 32], strides = [1, 1]} : vector<3x32xf32> to vector<1x32xf32>
    %2 = vector.extract_strided_slice %0 {offsets = [1, 0], sizes = [1, 32], strides = [1, 1]} : vector<3x32xf32> to vector<1x32xf32>
    %3 = vector.extract_strided_slice %0 {offsets = [2, 0], sizes = [1, 32], strides = [1, 1]} : vector<3x32xf32> to vector<1x32xf32>
    %c0_1 = arith.constant 0 : index
    %c0_2 = arith.constant 0 : index
    %4 = vector.load %arg1[%c0_1, %c0_2] : memref<16x16xf32, #tpu.memory_space<vmem>>, vector<16x16xf32>
    %c0_3 = arith.constant 0 : index
    %c0_4 = arith.constant 0 : index
    %5 = vector.load %arg2[%c0_3, %c0_4] : memref<16x32xf32, #tpu.memory_space<vmem>>, vector<16x32xf32>
    %cst = arith.constant dense<0.000000e+00> : vector<16x32xf32>
    %6 = tpu.matmul %4, %5, %cst {dimension_numbers = #tpu.dot_dimension_numbers<[1], [0], [0], [1], [0, 0, 1, 1], [], []>} : vector<16x16xf32>, vector<16x32xf32>, vector<16x32xf32> -> vector<16x32xf32>
    %7 = vector.broadcast %1 : vector<1x32xf32> to vector<16x32xf32>
    %8 = arith.addf %6, %7 : vector<16x32xf32>
    %cst_5 = arith.constant 0.000000e+00 : f32
    %9 = vector.broadcast %cst_5 : f32 to vector<16x32xf32>
    %10 = arith.maximumf %8, %9 : vector<16x32xf32>
    %c0_6 = arith.constant 0 : index
    %c0_7 = arith.constant 0 : index
    %c0_8 = arith.constant 0 : index
    %11 = vector.load %arg3[%c0_6, %c0_7, %c0_8] : memref<2x32x32xf32, #tpu.memory_space<vmem>>, vector<1x32x32xf32>
    %12 = vector.shape_cast %11 : vector<1x32x32xf32> to vector<32x32xf32>
    %cst_9 = arith.constant dense<0.000000e+00> : vector<16x32xf32>
    %13 = tpu.matmul %10, %12, %cst_9 {dimension_numbers = #tpu.dot_dimension_numbers<[1], [0], [0], [1], [0, 0, 1, 1], [], []>} : vector<16x32xf32>, vector<32x32xf32>, vector<16x32xf32> -> vector<16x32xf32>
    %14 = vector.broadcast %2 : vector<1x32xf32> to vector<16x32xf32>
    %15 = arith.addf %13, %14 : vector<16x32xf32>
    %cst_10 = arith.constant 0.000000e+00 : f32
    %16 = vector.broadcast %cst_10 : f32 to vector<16x32xf32>
    %17 = arith.maximumf %15, %16 : vector<16x32xf32>
    %c1 = arith.constant 1 : index
    %c0_11 = arith.constant 0 : index
    %c0_12 = arith.constant 0 : index
    %18 = vector.load %arg3[%c1, %c0_11, %c0_12] : memref<2x32x32xf32, #tpu.memory_space<vmem>>, vector<1x32x32xf32>
    %19 = vector.shape_cast %18 : vector<1x32x32xf32> to vector<32x32xf32>
    %cst_13 = arith.constant dense<0.000000e+00> : vector<16x32xf32>
    %20 = tpu.matmul %17, %19, %cst_13 {dimension_numbers = #tpu.dot_dimension_numbers<[1], [0], [0], [1], [0, 0, 1, 1], [], []>} : vector<16x32xf32>, vector<32x32xf32>, vector<16x32xf32> -> vector<16x32xf32>
    %21 = vector.broadcast %3 : vector<1x32xf32> to vector<16x32xf32>
    %22 = arith.addf %20, %21 : vector<16x32xf32>
    %23 = arith.truncf %22 : vector<16x32xf32> to vector<16x32xbf16>
    %c0_14 = arith.constant 0 : index
    %c0_15 = arith.constant 0 : index
    %24 = vector.load %arg5[%c0_14, %c0_15] : memref<16x32xbf16, #tpu.memory_space<vmem>>, vector<16x32xbf16>
    tpu.vector_store %arg5[%c0_14, %c0_15], %23 {strides = array<i32>} : memref<16x32xbf16, #tpu.memory_space<vmem>>, vector<16x32xbf16>,
    return
  }
  func.func @transform_0(%arg0: i32) -> (i32, i32) {
    %c0_i32 = arith.constant 0 : i32
    %c0_i32_0 = arith.constant 0 : i32
    return %arg0, %c0_i32 : i32, i32
  }
  func.func @transform_1(%arg0: i32) -> (i32, i32) {
    %c0_i32 = arith.constant 0 : i32
    %c0_i32_0 = arith.constant 0 : i32
    %c0_i32_1 = arith.constant 0 : i32
    return %c0_i32, %c0_i32_0 : i32, i32
  }
  func.func @transform_2(%arg0: i32) -> (i32, i32, i32) {
    %c0_i32 = arith.constant 0 : i32
    %c0_i32_0 = arith.constant 0 : i32
    %c0_i32_1 = arith.constant 0 : i32
    %c0_i32_2 = arith.constant 0 : i32
    return %c0_i32, %c0_i32_0, %c0_i32_1 : i32, i32, i32
  }
  func.func @transform_3(%arg0: i32) -> (i32, i32) {
    %c0_i32 = arith.constant 0 : i32
    %c0_i32_0 = arith.constant 0 : i32
    %c0_i32_1 = arith.constant 0 : i32
    return %c0_i32, %c0_i32_0 : i32, i32
  }
  func.func @transform_4(%arg0: i32) -> (i32, i32) {
    %c0_i32 = arith.constant 0 : i32
    %c0_i32_0 = arith.constant 0 : i32
    return %arg0, %c0_i32 : i32, i32
  }
}

</mosaic_0001>

<llo_original>
// kernel: tpu_custom_call.1
$region0: #{tpu_custom_call.1}
  #allocation0 [shape = 'u32[]', space=smem, size = 0x4, offset = 0x4, fixed_abs, tag = 'smem constant byte address 0x4 - core index']
  #allocation1 [shape = 'u32[144,128]{1,0:T(1,128)}', space=vmem, size = 0x12000, scoped, tag = 'internal scratch']
  %s0 = inlined_call_operand.hbm [shape: f32[16,16], index: 0, kind: input, shape index: {}]
  %s1 = inlined_call_operand.hbm [shape: f32[16,32], index: 1, kind: input, shape index: {}]
  %s2 = inlined_call_operand.hbm [shape: f32[2,32,32], index: 2, kind: input, shape index: {}]
  %s3 = inlined_call_operand.vmem [shape: f32[3,32], index: 3, kind: input, shape index: {}]
  %s4 = inlined_call_operand.hbm [shape: bf16[16,32], index: 4, kind: output, shape index: {}]
  %s5 = sld [smem:[#allocation0]]
  $region38: #{tpu_custom_call.1} parent=0
    _
  %s7 = ssub.s32 1, %s5
  %s8 = scalar_select 0, %s7, %s5
  $region1: #{tpu_custom_call.1} parent=0
    #allocation2 [shape = 'u8[8192]{0}', space=vmem, size = 0x2000, scoped, tag = 'input window, operand 0, single buffered']
    #allocation3 [shape = 's32[1]{0}', space=sflag, size = 0x4, scoped, tag = 'scoped memory for tpu_custom_call.1']
    #allocation4 [shape = 's32[1]{0}', space=sflag, size = 0x4, scoped, tag = 'scoped memory for tpu_custom_call.1']
    #allocation5 [shape = 'u8[8192]{0}', space=vmem, size = 0x2000, scoped, tag = 'input window, operand 1, single buffered']
    #allocation6 [shape = 's32[1]{0}', space=sflag, size = 0x4, scoped, tag = 'scoped memory for tpu_custom_call.1']
    #allocation7 [shape = 'u8[32768]{0}', space=vmem, size = 0x8000, scoped, tag = 'input window, operand 2, single buffered']
    #allocation8 [shape = 'u8[4096]{0}', space=vmem, size = 0x1000, scoped, tag = 'output window, operand 0, single buffered']
    %9 = vsyncpa [#allocation3], 0
    %10 = vsyncpa [#allocation6], 0
    %11 = vsyncpa [#allocation4], 0
    // Predicated region
    $region2: #{tpu_custom_call.1} parent=1 // pred_check
      _
    $region3: #{tpu_custom_call.1} parent=1 // pred_check_branch
      %13 = sbr.rel (0) target = $region5
    $region4: #{tpu_custom_call.1} parent=1 // pred_region
      %s15 = ssub.s32 256, 256
      %16 = vsyncadd [#allocation3], %s15
      %s17 = sshll.u32 [#allocation2], 4
      %s18 = int_to_ptr.vmem [resolvable:$true] %s17
      %23 = dma.hbm_to_vmem [thread:$0]  %s0, 256, %s18, [#allocation3], 128, 128, 8
    $region5: #{tpu_custom_call.1} parent=1 // pred_fallthru
      _
    // Predicated region
    $region6: #{tpu_custom_call.1} parent=1 // pred_check
      _
    $region7: #{tpu_custom_call.1} parent=1 // pred_check_branch
      %25 = sbr.rel (0) target = $region9
    $region8: #{tpu_custom_call.1} parent=1 // pred_region
      %s27 = ssub.s32 256, 256
      %28 = vsyncadd [#allocation6], %s27
      %s29 = sshll.u32 [#allocation5], 4
      %s30 = int_to_ptr.vmem [resolvable:$true] %s29
      %35 = dma.hbm_to_vmem [thread:$0]  %s1, 256, %s30, [#allocation6], 128, 128, 8
    $region9: #{tpu_custom_call.1} parent=1 // pred_fallthru
      _
    // Predicated region
    $region10: #{tpu_custom_call.1} parent=1 // pred_check
      _
    $region11: #{tpu_custom_call.1} parent=1 // pred_check_branch
      %37 = sbr.rel (0) target = $region13
    $region12: #{tpu_custom_call.1} parent=1 // pred_region
      %s39 = ssub.s32 1024, 1024
      %40 = vsyncadd [#allocation6], %s39
      %s41 = sshll.u32 [#allocation7], 4
      %s42 = int_to_ptr.vmem [resolvable:$true] %s41
      %47 = dma.hbm_to_vmem [thread:$0]  %s2, 1024, %s42, [#allocation6], 128, 128, 8
    $region13: #{tpu_custom_call.1} parent=1 // pred_fallthru
      _
    // Predicated region
    $region14: #{tpu_custom_call.1} parent=1 // pred_check
      _
    $region15: #{tpu_custom_call.1} parent=1 // pred_check_branch
      %49 = sbr.rel (0) target = $region17
    $region16: #{tpu_custom_call.1} parent=1 // pred_region
      _
    $region17: #{tpu_custom_call.1} parent=1 // pred_fallthru
      _
    // Predicated region
    $region18: #{tpu_custom_call.1} parent=1 // pred_check
      _
    $region19: #{tpu_custom_call.1} parent=1 // pred_check_branch
      %51 = sbr.rel (0) target = $region21
    $region20: #{tpu_custom_call.1} parent=1 // pred_region
      %52 = dma.done [#allocation3], 256
    $region21: #{tpu_custom_call.1} parent=1 // pred_fallthru
      _
    // Predicated region
    $region22: #{tpu_custom_call.1} parent=1 // pred_check
      _
    $region23: #{tpu_custom_call.1} parent=1 // pred_check_branch
      %54 = sbr.rel (0) target = $region25
    $region24: #{tpu_custom_call.1} parent=1 // pred_region
      %55 = dma.done [#allocation6], 256
    $region25: #{tpu_custom_call.1} parent=1 // pred_fallthru
      _
    // Predicated region
    $region26: #{tpu_custom_call.1} parent=1 // pred_check
      _
    $region27: #{tpu_custom_call.1} parent=1 // pred_check_branch
      %57 = sbr.rel (0) target = $region29
    $region28: #{tpu_custom_call.1} parent=1 // pred_region
      %58 = dma.done [#allocation6], 1024
    $region29: #{tpu_custom_call.1} parent=1 // pred_fallthru
      _
    %v59 = vld [vmem:[%s3] sm:$0x7]
    %v60 = vld [vmem:[#allocation2] sm:$0xff]
    %v61 = vld [vmem:[#allocation2 + $0x8] sm:$0xff]
    %v62 = vld [vmem:[#allocation5] sm:$0xff]
    %v63 = vld [vmem:[#allocation5 + $0x8] sm:$0xff]
    %v64 = vlaneseq
    %v65 = vshrl.u32 %v64, 7
    %v66 = vsub.s32 0, %v65
    %v67 = vrot.slane %v59, %v66
    %vm68 = vcmask 130048
    %v70 = vsel %vm68, %v60, 0
    %v73 = vsel %vm68, %v61, 0
    %75 = vmatprep.subr.mxu0 0.0
    %76 = vmatpush1.msra.mxu0 %v62
    %77 = vmatprep.subr.mxu0 0.0
    %78 = vmatpush1.msra.mxu0 %v63
    %79 = vmatprep.subr.mxu0 0.0
    %80 = vmatpush1.msra.mxu0 0.0
    %81 = vmatprep.subr.mxu0 0.0
    %82 = vmatpush1.msra.mxu0 0.0
    %83 = vmatprep.subr.mxu0 0.0
    %84 = vmatpush1.msra.mxu0 0.0
    %85 = vmatprep.subr.mxu0 0.0
    %86 = vmatpush1.msra.mxu0 0.0
    %87 = vmatprep.subr.mxu0 0.0
    %88 = vmatpush1.msra.mxu0 0.0
    %89 = vmatprep.subr.mxu0 0.0
    %90 = vmatpush1.msra.mxu0 0.0
    %91 = vmatprep.subr.mxu0 0.0
    %92 = vmatpush1.msra.mxu0 0.0
    %93 = vmatprep.subr.mxu0 0.0
    %94 = vmatpush1.msra.mxu0 0.0
    %95 = vmatprep.subr.mxu0 0.0
    %96 = vmatpush1.msra.mxu0 0.0
    %97 = vmatprep.subr.mxu0 0.0
    %98 = vmatpush1.msra.mxu0 0.0
    %99 = vmatprep.subr.mxu0 0.0
    %100 = vmatpush1.msra.mxu0 0.0
    %101 = vmatprep.subr.mxu0 0.0
    %102 = vmatpush1.msra.mxu0 0.0
    %103 = vmatprep.subr.mxu0 0.0
    %104 = vmatpush1.msra.mxu0 0.0
    %105 = vmatprep.subr.mxu0 0.0
    %106 = vmatpush1.msra.mxu0 0.0
    %107 = vmatprep.subr.mxu0 0.0
    %108 = vmatpush1.msra.mxu0 0.0
    %109 = vmatprep.subr.mxu0 0.0
    %110 = vmatpush1.msra.mxu0 0.0
    %111 = vmatprep.subr.mxu0 0.0
    %112 = vmatpush1.msra.mxu0 0.0
    %113 = vmatprep.subr.mxu0 0.0
    %114 = vmatpush1.msra.mxu0 0.0
    %115 = vmatprep.subr.mxu0 0.0
    %116 = vmatpush1.msra.mxu0 0.0
    %117 = vmatprep.subr.mxu0 0.0
    %118 = vmatpush1.msra.mxu0 0.0
    %119 = vmatprep.subr.mxu0 0.0
    %120 = vmatpush1.msra.mxu0 0.0
    %121 = vmatprep.subr.mxu0 0.0
    %122 = vmatpush1.msra.mxu0 0.0
    %123 = vmatprep.subr.mxu0 0.0
    %124 = vmatpush1.msra.mxu0 0.0
    %125 = vmatprep.subr.mxu0 0.0
    %126 = vmatpush1.msra.mxu0 0.0
    %127 = vmatprep.subr.mxu0 0.0
    %128 = vmatpush1.msra.mxu0 0.0
    %129 = vmatprep.subr.mxu0 0.0
    %130 = vmatpush1.msra.mxu0 0.0
    %131 = vmatprep.subr.mxu0 0.0
    %132 = vmatpush1.msra.mxu0 0.0
    %133 = vmatprep.subr.mxu0 0.0
    %134 = vmatpush1.msra.mxu0 0.0
    %135 = vmatprep.subr.mxu0 0.0
    %136 = vmatpush1.msra.mxu0 0.0
    %137 = vmatprep.subr.mxu0 0.0
    %138 = vmatpush1.msra.mxu0 0.0
    %139 = vmatprep.mubr.f32.mxu0 0.0
    %140 = vmatmul.mubr.f32.gmra.mrb[0].mxu0 %v70
    %v141 = vpop.f32.mrb[0].mxu0
    %v142 = vadd.f32 %v67, %v141
    %v143 = vpop.f32.mrb[0].mxu0
    %144 = vmatprep.mubr.f32.mxu0 0.0
    %145 = vmatmul.mubr.f32.gmra.mrb[0].mxu0 %v73
    %v146 = vpop.f32.mrb[0].mxu0
    %v147 = vadd.f32 %v67, %v146
    %v148 = vpop.f32.mrb[0].mxu0
    %149 = vdwg.mxu0
    %v150 = vmax.f32 %v142, 0.0
    %v151 = vmax.f32 %v147, 0.0
    %v152 = vld [vmem:[#allocation7] sm:$0xff]
    %v153 = vld [vmem:[#allocation7 + $0x8] sm:$0xff]
    %v154 = vld [vmem:[#allocation7 + $0x10] sm:$0xff]
    %v155 = vld [vmem:[#allocation7 + $0x18] sm:$0xff]
    %v156 = vlaneseq
    %v157 = vshrl.u32 %v156, 7
    %v158 = vsub.s32 1, %v157
    %v159 = vrot.slane %v59, %v158
    %vm160 = vcmask 261120
    %v162 = vsel %vm160, %v150, 0
    %v165 = vsel %vm160, %v151, 0
    %167 = vmatprep.subr.mxu0 0.0
    %168 = vmatpush1.msra.mxu0 %v152
    %169 = vmatprep.subr.mxu0 0.0
    %170 = vmatpush1.msra.mxu0 %v153
    %171 = vmatprep.subr.mxu0 0.0
    %172 = vmatpush1.msra.mxu0 %v154
    %173 = vmatprep.subr.mxu0 0.0
    %174 = vmatpush1.msra.mxu0 %v155
    %175 = vmatprep.subr.mxu0 0.0
    %176 = vmatpush1.msra.mxu0 0.0
    %177 = vmatprep.subr.mxu0 0.0
    %178 = vmatpush1.msra.mxu0 0.0
    %179 = vmatprep.subr.mxu0 0.0
    %180 = vmatpush1.msra.mxu0 0.0
    %181 = vmatprep.subr.mxu0 0.0
    %182 = vmatpush1.msra.mxu0 0.0
    %183 = vmatprep.subr.mxu0 0.0
    %184 = vmatpush1.msra.mxu0 0.0
    %185 = vmatprep.subr.mxu0 0.0
    %186 = vmatpush1.msra.mxu0 0.0
    %187 = vmatprep.subr.mxu0 0.0
    %188 = vmatpush1.msra.mxu0 0.0
    %189 = vmatprep.subr.mxu0 0.0
    %190 = vmatpush1.msra.mxu0 0.0
    %191 = vmatprep.subr.mxu0 0.0
    %192 = vmatpush1.msra.mxu0 0.0
    %193 = vmatprep.subr.mxu0 0.0
    %194 = vmatpush1.msra.mxu0 0.0
    %195 = vmatprep.subr.mxu0 0.0
    %196 = vmatpush1.msra.mxu0 0.0
    %197 = vmatprep.subr.mxu0 0.0
    %198 = vmatpush1.msra.mxu0 0.0
    %199 = vmatprep.subr.mxu0 0.0
    %200 = vmatpush1.msra.mxu0 0.0
    %201 = vmatprep.subr.mxu0 0.0
    %202 = vmatpush1.msra.mxu0 0.0
    %203 = vmatprep.subr.mxu0 0.0
    %204 = vmatpush1.msra.mxu0 0.0
    %205 = vmatprep.subr.mxu0 0.0
    %206 = vmatpush1.msra.mxu0 0.0
    %207 = vmatprep.subr.mxu0 0.0
    %208 = vmatpush1.msra.mxu0 0.0
    %209 = vmatprep.subr.mxu0 0.0
    %210 = vmatpush1.msra.mxu0 0.0
    %211 = vmatprep.subr.mxu0 0.0
    %212 = vmatpush1.msra.mxu0 0.0
    %213 = vmatprep.subr.mxu0 0.0
    %214 = vmatpush1.msra.mxu0 0.0
    %215 = vmatprep.subr.mxu0 0.0
    %216 = vmatpush1.msra.mxu0 0.0
    %217 = vmatprep.subr.mxu0 0.0
    %218 = vmatpush1.msra.mxu0 0.0
    %219 = vmatprep.subr.mxu0 0.0
    %220 = vmatpush1.msra.mxu0 0.0
    %221 = vmatprep.subr.mxu0 0.0
    %222 = vmatpush1.msra.mxu0 0.0
    %223 = vmatprep.subr.mxu0 0.0
    %224 = vmatpush1.msra.mxu0 0.0
    %225 = vmatprep.subr.mxu0 0.0
    %226 = vmatpush1.msra.mxu0 0.0
    %227 = vmatprep.subr.mxu0 0.0
    %228 = vmatpush1.msra.mxu0 0.0
    %229 = vmatprep.subr.mxu0 0.0
    %230 = vmatpush1.msra.mxu0 0.0
    %231 = vmatprep.mubr.f32.mxu0 0.0
    %232 = vmatmul.mubr.f32.gmra.mrb[0].mxu0 %v162
    %v233 = vpop.f32.mrb[0].mxu0
    %v234 = vadd.f32 %v159, %v233
    %v235 = vpop.f32.mrb[0].mxu0
    %236 = vmatprep.mubr.f32.mxu0 0.0
    %237 = vmatmul.mubr.f32.gmra.mrb[0].mxu0 %v165
    %v238 = vpop.f32.mrb[0].mxu0
    %v239 = vadd.f32 %v159, %v238
    %v240 = vpop.f32.mrb[0].mxu0
    %241 = vdwg.mxu0
    %v242 = vmax.f32 %v234, 0.0
    %v243 = vmax.f32 %v239, 0.0
    %s244 = scalar_lea.vmem [#allocation7], 32
    %v245 = vld [vmem:[%s244] sm:$0xff]
    %v246 = vld [vmem:[%s244 + $0x8] sm:$0xff]
    %v247 = vld [vmem:[%s244 + $0x10] sm:$0xff]
    %v248 = vld [vmem:[%s244 + $0x18] sm:$0xff]
    %v249 = vlaneseq
    %v250 = vshrl.u32 %v249, 7
    %v251 = vsub.s32 2, %v250
    %v252 = vrot.slane %v59, %v251
    %v254 = vsel %vm160, %v242, 0
    %v257 = vsel %vm160, %v243, 0
    %259 = vmatprep.subr.mxu0 0.0
    %260 = vmatpush1.msra.mxu0 %v245
    %261 = vmatprep.subr.mxu0 0.0
    %262 = vmatpush1.msra.mxu0 %v246
    %263 = vmatprep.subr.mxu0 0.0
    %264 = vmatpush1.msra.mxu0 %v247
    %265 = vmatprep.subr.mxu0 0.0
    %266 = vmatpush1.msra.mxu0 %v248
    %267 = vmatprep.subr.mxu0 0.0
    %268 = vmatpush1.msra.mxu0 0.0
    %269 = vmatprep.subr.mxu0 0.0
    %270 = vmatpush1.msra.mxu0 0.0
    %271 = vmatprep.subr.mxu0 0.0
    %272 = vmatpush1.msra.mxu0 0.0
    %273 = vmatprep.subr.mxu0 0.0
    %274 = vmatpush1.msra.mxu0 0.0
    %275 = vmatprep.subr.mxu0 0.0
    %276 = vmatpush1.msra.mxu0 0.0
    %277 = vmatprep.subr.mxu0 0.0
    %278 = vmatpush1.msra.mxu0 0.0
    %279 = vmatprep.subr.mxu0 0.0
    %280 = vmatpush1.msra.mxu0 0.0
    %281 = vmatprep.subr.mxu0 0.0
    %282 = vmatpush1.msra.mxu0 0.0
    %283 = vmatprep.subr.mxu0 0.0
    %284 = vmatpush1.msra.mxu0 0.0
    %285 = vmatprep.subr.mxu0 0.0
    %286 = vmatpush1.msra.mxu0 0.0
    %287 = vmatprep.subr.mxu0 0.0
    %288 = vmatpush1.msra.mxu0 0.0
    %289 = vmatprep.subr.mxu0 0.0
    %290 = vmatpush1.msra.mxu0 0.0
    %291 = vmatprep.subr.mxu0 0.0
    %292 = vmatpush1.msra.mxu0 0.0
    %293 = vmatprep.subr.mxu0 0.0
    %294 = vmatpush1.msra.mxu0 0.0
    %295 = vmatprep.subr.mxu0 0.0
    %296 = vmatpush1.msra.mxu0 0.0
    %297 = vmatprep.subr.mxu0 0.0
    %298 = vmatpush1.msra.mxu0 0.0
    %299 = vmatprep.subr.mxu0 0.0
    %300 = vmatpush1.msra.mxu0 0.0
    %301 = vmatprep.subr.mxu0 0.0
    %302 = vmatpush1.msra.mxu0 0.0
    %303 = vmatprep.subr.mxu0 0.0
    %304 = vmatpush1.msra.mxu0 0.0
    %305 = vmatprep.subr.mxu0 0.0
    %306 = vmatpush1.msra.mxu0 0.0
    %307 = vmatprep.subr.mxu0 0.0
    %308 = vmatpush1.msra.mxu0 0.0
    %309 = vmatprep.subr.mxu0 0.0
    %310 = vmatpush1.msra.mxu0 0.0
    %311 = vmatprep.subr.mxu0 0.0
    %312 = vmatpush1.msra.mxu0 0.0
    %313 = vmatprep.subr.mxu0 0.0
    %314 = vmatpush1.msra.mxu0 0.0
    %315 = vmatprep.subr.mxu0 0.0
    %316 = vmatpush1.msra.mxu0 0.0
    %317 = vmatprep.subr.mxu0 0.0
    %318 = vmatpush1.msra.mxu0 0.0
    %319 = vmatprep.subr.mxu0 0.0
    %320 = vmatpush1.msra.mxu0 0.0
    %321 = vmatprep.subr.mxu0 0.0
    %322 = vmatpush1.msra.mxu0 0.0
    %323 = vmatprep.mubr.f32.mxu0 0.0
    %324 = vmatmul.mubr.f32.gmra.mrb[0].mxu0 %v254
    %v325 = vpop.f32.mrb[0].mxu0
    %v326 = vadd.f32 %v252, %v325
    %v327 = vpop.f32.mrb[0].mxu0
    %328 = vmatprep.mubr.f32.mxu0 0.0
    %329 = vmatmul.mubr.f32.gmra.mrb[0].mxu0 %v257
    %v330 = vpop.f32.mrb[0].mxu0
    %v331 = vadd.f32 %v252, %v330
    %v332 = vpop.f32.mrb[0].mxu0
    %333 = vdwg.mxu0
    %v334 = vpack.c.bf16 %v331, %v326
    %v336 = vunpack.c.l.b16 %v334
    %v337 = vunpack.c.h.b16 %v334
    %v338 = vpack.c.b16 %v336, %v336
    %v339 = vpack.c.b16 %v337, %v337
    %vm342 = vcmask 257024
    %343 = vst.msk [vmem:[#allocation8] sm:$0xf] %vm342, %v338
    %344 = vst.msk [vmem:[#allocation8 + $0x4] sm:$0xf] %vm342, %v339
    // Predicated region
    $region30: #{tpu_custom_call.1} parent=1 // pred_check
      _
    $region31: #{tpu_custom_call.1} parent=1 // pred_check_branch
      %346 = sbr.rel (0) target = $region33
    $region32: #{tpu_custom_call.1} parent=1 // pred_region
      %s348 = ssub.s32 128, 128
      %349 = vsyncadd [#allocation4], %s348
      %s350 = sshll.u32 [#allocation8], 4
      %s351 = int_to_ptr.vmem [resolvable:$true] %s350
      %356 = dma.vmem_to_hbm [thread:$0]  %s351, 128, %s4, [#allocation4], 64, 64, 4
    $region33: #{tpu_custom_call.1} parent=1 // pred_fallthru
      _
    // Predicated region
    $region34: #{tpu_custom_call.1} parent=1 // pred_check
      _
    $region35: #{tpu_custom_call.1} parent=1 // pred_check_branch
      %358 = sbr.rel (0) target = $region37
    $region36: #{tpu_custom_call.1} parent=1 // pred_region
      %359 = dma.done [#allocation4], 128
    $region37: #{tpu_custom_call.1} parent=1 // pred_fallthru
      _
    %360 = vsyncpa [#allocation3], 1
    %361 = vsyncpa [#allocation6], 1
    %362 = vsyncpa [#allocation4], 1

</llo_original>
